<compile_context>
chip_gen: v5e
topology: v5e:2x2
jax: 0.10.0
libtpu: 0.0.40
codegen_flags: <defaults>
</compile_context>

<pallas_src>
import functools
import math

import jax
import jax.numpy as jnp
from jax.experimental import pallas as pl
from jax.experimental.pallas import tpu as pltpu

# ----------------------------- constants (Box3dCoder weights) ---------------
INV_DIM_W = (1.0 / 5.0, 1.0 / 5.0, 1.0 / 5.0)      # 1 / first three weights
INV_XYZ_W = (1.0 / 10.0, 1.0 / 10.0, 1.0 / 10.0)   # 1 / last three weights

_LANE = 128
_MAX_TILE_N = 4096        # lanes per grid step (well under scoped VMEM on all gens)
_SPLIT_THRESHOLD = 1024   # above this many lanes, force >=2 grid steps (2 TCs on v7x)


# ----------------------------- in-kernel math helpers ------------------------
def _rcp(x):
    """EUP approximate reciprocal + one Newton step (restores ~f32 accuracy)."""
    r = pl.reciprocal(x, approx=True)
    return r * (2.0 - x * r)


def _atan(x):
    """arctan via range reduction + 9th-order polynomial; divide -> EUP vrcp."""
    ax = jnp.abs(x)
    inv = ax > 1.0
    t = jnp.where(inv, _rcp(jnp.maximum(ax, 1e-30)), ax)
    t2 = t * t
    p = t * (0.9998660 + t2 * (-0.3302995 + t2 * (0.1801410 +
             t2 * (-0.0851330 + t2 * 0.0208351))))
    r = jnp.where(inv, (math.pi / 2.0) - p, p)
    return jnp.where(x < 0.0, -r, r)


def _atan2(y, x):
    safe_x = jnp.where(x == 0.0, 1e-30, x)
    a = _atan(y * _rcp(safe_x))
    a = jnp.where(x < 0.0, jnp.where(y >= 0.0, a + math.pi, a - math.pi), a)
    return a


def _pick(mat, base, k):
    """Select one row per lane: sum over sublanes where base == k (one-hot)."""
    return jnp.sum(jnp.where(base == k, mat, 0.0), axis=0, keepdims=True)


# ----------------------------- Pallas kernel ---------------------------------
def _postproc_kernel(packed_ref, out_ref, *, f3, nb, num_classes):
    packed = packed_ref[...]                         # (F_total, T) f32
    t = packed.shape[1]

    # labels were stored as exact small floats; convert back and clamp so
    # padded / out-of-range lanes stay well-defined.
    labels = packed[0:1, :].astype(jnp.int32)        # (1, T)
    li = jnp.clip(labels - 1, 0, num_classes - 1)    # labels_index, clamped

    r = 1
    dim_reg = packed[r:r + f3, :]; r += f3           # (3C, T)
    logits = packed[r:r + nb, :]; r += nb            # (B, T)
    rot_reg = packed[r:r + 2 * nb, :]; r += 2 * nb   # (2B, T)
    loc_reg = packed[r:r + f3, :]; r += f3           # (3C, T)
    bbox = packed[r:r + 4, :]                        # (4, T) xyxy

    # Shared sublane iota for dim- and loc-gathers (same (3C, T) shape).
    rows3 = jax.lax.broadcasted_iota(jnp.int32, (f3, t), 0)
    base_dim = rows3 - 3 * li                        # == 0/1/2 selects gathered row
    base_loc = rows3 - 2 * li                        # stride-2 map_inds, as in reference

    # ---- pred_box_3d_dim: gather 3*(label-1)+[0,1,2], Box3dCoder.decode -----
    # TODO(synk): real Box3dCoder.decode multiplies exp(reg/w) by per-class
    # template dims; templates are not available here so unit dims are used.
    d0 = jnp.exp(_pick(dim_reg, base_dim, 0) * INV_DIM_W[0])
    d1 = jnp.exp(_pick(dim_reg, base_dim, 1) * INV_DIM_W[1])
    d2 = jnp.exp(_pick(dim_reg, base_dim, 2) * INV_DIM_W[2])

    # ---- orientation decode (MultiBin): argmax bin + atan2(sin, cos) --------
    # TODO(synk): orientation_coder is injected in the original module; a
    # standard MultiBin decode is implemented here.
    bin_rows = jax.lax.broadcasted_iota(jnp.int32, (nb, t), 0)
    max_logit = jnp.max(logits, axis=0, keepdims=True)
    bin_i = jnp.min(jnp.where(logits >= max_logit, bin_rows, nb),
                    axis=0, keepdims=True)           # first-argmax, (1, T)
    bin_i = jnp.minimum(bin_i, nb - 1)               # guard: NaN logits stay in range
    bin_f = bin_i.astype(jnp.float32)
    rot_rows = jax.lax.broadcasted_iota(jnp.int32, (2 * nb, t), 0)
    rot_base = rot_rows - 2 * bin_i
    sin_v = _pick(rot_reg, rot_base, 0)
    cos_v = _pick(rot_reg, rot_base, 1)
    alpha = _atan2(sin_v, cos_v) + bin_f * (2.0 * math.pi / float(nb))

    # ---- localization gather: map_inds = 2*(label-1)+[0,1,2] (as in ref) ----
    lx = _pick(loc_reg, base_loc, 0) * INV_XYZ_W[0]
    ly = _pick(loc_reg, base_loc, 1) * INV_XYZ_W[1]
    lz = _pick(loc_reg, base_loc, 2) * INV_XYZ_W[2]

    # center_decode reference from the 2-D box centre.
    # TODO(synk): the true center_decode back-projects with per-image camera
    # calibration (img_original_ids); calibration is not available in-script.
    cx = (bbox[0:1, :] + bbox[2:3, :]) * 0.5
    cy = (bbox[1:2, :] + bbox[3:4, :]) * 0.5
    px = lx + 0.01 * cx
    py = ly + 0.01 * cy + 1.0
    pz = lz + 10.0

    # ---- ry = alpha + atan(x / y)  (exactly as written in the reference) ----
    ry = alpha + _atan(px * _rcp(jnp.where(py == 0.0, 1e-30, py)))

    # ---- eight direct lane-dense row stores (no sublane concat/shuffle) -----
    out_ref[0:1, :] = ry
    out_ref[1:2, :] = d0
    out_ref[2:3, :] = d1
    out_ref[3:4, :] = d2
    out_ref[4:5, :] = px
    out_ref[5:6, :] = py
    out_ref[6:7, :] = pz
    out_ref[7:8, :] = alpha


# ----------------------------- wrapper (glue) --------------------------------
def _round_up(x, m):
    return ((x + m - 1) // m) * m


@jax.jit
def postprocess_box3d(labels, dim_reg, rot_logits, rot_reg, loc_reg, bbox):
    """Returns (pred_box_3d (N,7), alphas (N,1)).

    Inputs follow the PyTorch layout: labels (N,), dim_reg (N, 3C),
    rot_logits (N, B), rot_reg (N, 2B), loc_reg (N, 3C), bbox (N, 4).
    Everything is packed into a single lane-dense (F_total, N) operand with
    one concat, one transpose and one pad (all fused under jit).
    """
    n, f3 = dim_reg.shape
    nb = rot_logits.shape[1]
    num_classes = f3 // 3
    f_total = 1 + f3 + nb + 2 * nb + f3 + 4

    # ---- single pre-packed operand: ONE concat, ONE transpose, ONE pad ------
    packed = jnp.concatenate([
        jnp.reshape(labels, (n, 1)).astype(jnp.float32),   # exact small ints
        jnp.asarray(dim_reg, jnp.float32),
        jnp.asarray(rot_logits, jnp.float32),
        jnp.asarray(rot_reg, jnp.float32),
        jnp.asarray(loc_reg, jnp.float32),
        jnp.asarray(bbox, jnp.float32),
    ], axis=1).T                                           # (F_total, N), lane-dense on N

    # ---- tile / grid choice --------------------------------------------------
    n_lanes = _round_up(max(n, 1), _LANE)
    if n_lanes <= _SPLIT_THRESHOLD:
        tile = n_lanes                                     # one step; overhead-bound regime
    else:
        # >=2 grid steps so "parallel" shards across v7x's two TensorCores.
        tile = min(_MAX_TILE_N, _round_up((n_lanes + 1) // 2, _LANE))
    n_pad = _round_up(n_lanes, tile)
    grid_n = n_pad // tile
    if n_pad != n:
        packed = jnp.pad(packed, ((0, 0), (0, n_pad - n)))  # zero pad; clamp handles tail

    kernel = functools.partial(_postproc_kernel, f3=f3, nb=nb,
                               num_classes=num_classes)

    cost = pl.CostEstimate(flops=250 * n_pad,
                           transcendentals=10 * n_pad,
                           bytes_accessed=4 * n_pad * (f_total + 8))

    out = pl.pallas_call(
        kernel,
        grid=(grid_n,),
        in_specs=[pl.BlockSpec((f_total, tile), lambda i: (0, i))],
        out_specs=pl.BlockSpec((8, tile), lambda i: (0, i)),
        out_shape=jax.ShapeDtypeStruct((8, n_pad), jnp.float32),
        compiler_params=pltpu.CompilerParams(
            dimension_semantics=("parallel",),             # boxes are independent
            vmem_limit_bytes=32 * 1024 * 1024),
        cost_estimate=cost,
    )(packed)

    # ---- ONE post-kernel transpose feeds both outputs ------------------------
    out_t = out[:, :n].T                   # (N, 8)
    pred_box_3d = out_t[:, :7]             # (N, 7) = [ry, dims(3), xyz(3)]
    alphas = out_t[:, 7:8]                 # (N, 1)
    return pred_box_3d, alphas


# ----------------------------- demo ------------------------------------------
if __name__ == "__main__":
    key = jax.random.PRNGKey(0)
    num_classes = 4      # foreground classes (labels in 1..num_classes)
    num_bins = 2         # orientation bins
    boxes_per_image = [8, 8]
    n = sum(boxes_per_image)

    ks = jax.random.split(key, 6)
    dim_reg = (0.1 * jax.random.normal(ks[0], (n, 3 * num_classes))).astype(jnp.float32)
    rot_logits = jax.random.normal(ks[1], (n, num_bins)).astype(jnp.float32)
    rot_reg = jax.random.normal(ks[2], (n, 2 * num_bins)).astype(jnp.float32)
    loc_reg = (0.5 * jax.random.normal(ks[3], (n, 3 * num_classes))).astype(jnp.float32)
    labels = jax.random.randint(ks[4], (n,), 1, num_classes + 1, dtype=jnp.int32)
    x1y1 = jax.random.uniform(ks[5], (n, 2), minval=0.0, maxval=200.0)
    bbox = jnp.concatenate([x1y1, x1y1 + 50.0], axis=1).astype(jnp.float32)

    pred_box_3d, alphas = postprocess_box3d(
        labels, dim_reg, rot_logits, rot_reg, loc_reg, bbox)
    jax.block_until_ready((pred_box_3d, alphas))

    # Glue: split per image, mimicking the list[BoxList] output structure.
    split_pts = [boxes_per_image[0]]
    pred_box_3d_per_image = jnp.split(pred_box_3d, split_pts, axis=0)
    alphas_per_image = jnp.split(alphas, split_pts, axis=0)

    assert pred_box_3d.shape == (n, 7) and alphas.shape == (n, 1)
    assert len(pred_box_3d_per_image) == 2 and len(alphas_per_image) == 2
    assert bool(jnp.all(jnp.isfinite(pred_box_3d)))
    assert bool(jnp.all(jnp.isfinite(alphas)))
    print("KERNEL_OK")
</pallas_src>

<mosaic_0001>
module attributes {stable_mosaic.version = 11 : i64} {
  func.func @_postproc_kernel(%arg0: i32, %arg1: memref<35x128xf32, #tpu.memory_space<vmem>>, %arg2: memref<8x128xf32, #tpu.memory_space<vmem>>) attributes {dimension_semantics = [#tpu.dimension_semantics<parallel>], iteration_bounds = array<i64: 1>, scalar_prefetch = 0 : i64, scratch_operands = 0 : i64, tpu.core_type = #tpu.core_type<tc>, window_params = [{transform_indices = @transform_0, window_bounds = array<i64: 35, 128>}, {transform_indices = @transform_1, window_bounds = array<i64: 8, 128>}]} {
    %c0 = arith.constant 0 : index
    %c0_0 = arith.constant 0 : index
    %0 = vector.load %arg1[%c0, %c0_0] : memref<35x128xf32, #tpu.memory_space<vmem>>, vector<35x128xf32>
    %1 = vector.extract_strided_slice %0 {offsets = [0, 0], sizes = [1, 128], strides = [1, 1]} : vector<35x128xf32> to vector<1x128xf32>
    %2 = arith.fptosi %1 : vector<1x128xf32> to vector<1x128xi32>
    %c1_i32 = arith.constant 1 : i32
    %3 = vector.broadcast %c1_i32 : i32 to vector<1x128xi32>
    %4 = arith.subi %2, %3 : vector<1x128xi32>
    %c0_i32 = arith.constant 0 : i32
    %c3_i32 = arith.constant 3 : i32
    %5 = vector.broadcast %c0_i32 : i32 to vector<1x128xi32>
    %6 = arith.maxsi %5, %4 : vector<1x128xi32>
    %7 = vector.broadcast %c3_i32 : i32 to vector<1x128xi32>
    %8 = arith.minsi %7, %6 : vector<1x128xi32>
    %9 = vector.extract_strided_slice %0 {offsets = [1, 0], sizes = [12, 128], strides = [1, 1]} : vector<35x128xf32> to vector<12x128xf32>
    %10 = vector.extract_strided_slice %0 {offsets = [13, 0], sizes = [2, 128], strides = [1, 1]} : vector<35x128xf32> to vector<2x128xf32>
    %11 = vector.extract_strided_slice %0 {offsets = [15, 0], sizes = [4, 128], strides = [1, 1]} : vector<35x128xf32> to vector<4x128xf32>
    %12 = vector.extract_strided_slice %0 {offsets = [19, 0], sizes = [12, 128], strides = [1, 1]} : vector<35x128xf32> to vector<12x128xf32>
    %13 = vector.extract_strided_slice %0 {offsets = [31, 0], sizes = [4, 128], strides = [1, 1]} : vector<35x128xf32> to vector<4x128xf32>
    %14 = tpu.iota {dimensions = array<i32: 0>} : vector<12x128xi32>
    %c3_i32_1 = arith.constant 3 : i32
    %15 = vector.broadcast %c3_i32_1 : i32 to vector<1x128xi32>
    %16 = arith.muli %15, %8 : vector<1x128xi32>
    %17 = vector.broadcast %16 : vector<1x128xi32> to vector<12x128xi32>
    %18 = arith.subi %14, %17 : vector<12x128xi32>
    %c2_i32 = arith.constant 2 : i32
    %19 = vector.broadcast %c2_i32 : i32 to vector<1x128xi32>
    %20 = arith.muli %19, %8 : vector<1x128xi32>
    %21 = vector.broadcast %20 : vector<1x128xi32> to vector<12x128xi32>
    %22 = arith.subi %14, %21 : vector<12x128xi32>
    %c0_i32_2 = arith.constant 0 : i32
    %23 = vector.broadcast %c0_i32_2 : i32 to vector<12x128xi32>
    %24 = arith.cmpi eq, %18, %23 : vector<12x128xi32>
    %cst = arith.constant 0.000000e+00 : f32
    %25 = vector.broadcast %cst : f32 to vector<12x128xf32>
    %26 = arith.select %24, %9, %25 : vector<12x128xi1>, vector<12x128xf32>
    %cst_3 = arith.constant dense<0.000000e+00> : vector<128xf32>
    %27 = vector.multi_reduction <add>, %26, %cst_3 [0] : vector<12x128xf32> to vector<128xf32>
    %28 = vector.shape_cast %27 : vector<128xf32> to vector<1x128xf32>
    %cst_4 = arith.constant 2.000000e-01 : f32
    %29 = vector.broadcast %cst_4 : f32 to vector<1x128xf32>
    %30 = arith.mulf %28, %29 : vector<1x128xf32>
    %31 = math.exp %30 : vector<1x128xf32>
    %c1_i32_5 = arith.constant 1 : i32
    %32 = vector.broadcast %c1_i32_5 : i32 to vector<12x128xi32>
    %33 = arith.cmpi eq, %18, %32 : vector<12x128xi32>
    %cst_6 = arith.constant 0.000000e+00 : f32
    %34 = vector.broadcast %cst_6 : f32 to vector<12x128xf32>
    %35 = arith.select %33, %9, %34 : vector<12x128xi1>, vector<12x128xf32>
    %cst_7 = arith.constant dense<0.000000e+00> : vector<128xf32>
    %36 = vector.multi_reduction <add>, %35, %cst_7 [0] : vector<12x128xf32> to vector<128xf32>
    %37 = vector.shape_cast %36 : vector<128xf32> to vector<1x128xf32>
    %cst_8 = arith.constant 2.000000e-01 : f32
    %38 = vector.broadcast %cst_8 : f32 to vector<1x128xf32>
    %39 = arith.mulf %37, %38 : vector<1x128xf32>
    %40 = math.exp %39 : vector<1x128xf32>
    %c2_i32_9 = arith.constant 2 : i32
    %41 = vector.broadcast %c2_i32_9 : i32 to vector<12x128xi32>
    %42 = arith.cmpi eq, %18, %41 : vector<12x128xi32>
    %cst_10 = arith.constant 0.000000e+00 : f32
    %43 = vector.broadcast %cst_10 : f32 to vector<12x128xf32>
    %44 = arith.select %42, %9, %43 : vector<12x128xi1>, vector<12x128xf32>
    %cst_11 = arith.constant dense<0.000000e+00> : vector<128xf32>
    %45 = vector.multi_reduction <add>, %44, %cst_11 [0] : vector<12x128xf32> to vector<128xf32>
    %46 = vector.shape_cast %45 : vector<128xf32> to vector<1x128xf32>
    %cst_12 = arith.constant 2.000000e-01 : f32
    %47 = vector.broadcast %cst_12 : f32 to vector<1x128xf32>
    %48 = arith.mulf %46, %47 : vector<1x128xf32>
    %49 = math.exp %48 : vector<1x128xf32>
    %50 = tpu.iota {dimensions = array<i32: 0>} : vector<2x128xi32>
    %cst_13 = arith.constant dense<0xFF800000> : vector<128xf32>
    %51 = vector.multi_reduction <maximumf>, %10, %cst_13 [0] : vector<2x128xf32> to vector<128xf32>
    %52 = vector.shape_cast %51 : vector<128xf32> to vector<1x128xf32>
    %53 = vector.broadcast %52 : vector<1x128xf32> to vector<2x128xf32>
    %54 = arith.cmpf oge, %10, %53 : vector<2x128xf32>
    %c2_i32_14 = arith.constant 2 : i32
    %55 = vector.broadcast %c2_i32_14 : i32 to vector<2x128xi32>
    %56 = arith.select %54, %50, %55 : vector<2x128xi1>, vector<2x128xi32>
    %cst_15 = arith.constant dense<2147483647> : vector<128xi32>
    %57 = vector.multi_reduction <minsi>, %56, %cst_15 [0] : vector<2x128xi32> to vector<128xi32>
    %58 = vector.shape_cast %57 : vector<128xi32> to vector<1x128xi32>
    %c1_i32_16 = arith.constant 1 : i32
    %59 = vector.broadcast %c1_i32_16 : i32 to vector<1x128xi32>
    %60 = arith.minsi %58, %59 : vector<1x128xi32>
    %61 = arith.sitofp %60 : vector<1x128xi32> to vector<1x128xf32>
    %62 = tpu.iota {dimensions = array<i32: 0>} : vector<4x128xi32>
    %c2_i32_17 = arith.constant 2 : i32
    %63 = vector.broadcast %c2_i32_17 : i32 to vector<1x128xi32>
    %64 = arith.muli %63, %60 : vector<1x128xi32>
    %65 = vector.broadcast %64 : vector<1x128xi32> to vector<4x128xi32>
    %66 = arith.subi %62, %65 : vector<4x128xi32>
    %c0_i32_18 = arith.constant 0 : i32
    %67 = vector.broadcast %c0_i32_18 : i32 to vector<4x128xi32>
    %68 = arith.cmpi eq, %66, %67 : vector<4x128xi32>
    %cst_19 = arith.constant 0.000000e+00 : f32
    %69 = vector.broadcast %cst_19 : f32 to vector<4x128xf32>
    %70 = arith.select %68, %11, %69 : vector<4x128xi1>, vector<4x128xf32>
    %cst_20 = arith.constant dense<0.000000e+00> : vector<128xf32>
    %71 = vector.multi_reduction <add>, %70, %cst_20 [0] : vector<4x128xf32> to vector<128xf32>
    %72 = vector.shape_cast %71 : vector<128xf32> to vector<1x128xf32>
    %c1_i32_21 = arith.constant 1 : i32
    %73 = vector.broadcast %c1_i32_21 : i32 to vector<4x128xi32>
    %74 = arith.cmpi eq, %66, %73 : vector<4x128xi32>
    %cst_22 = arith.constant 0.000000e+00 : f32
    %75 = vector.broadcast %cst_22 : f32 to vector<4x128xf32>
    %76 = arith.select %74, %11, %75 : vector<4x128xi1>, vector<4x128xf32>
    %cst_23 = arith.constant dense<0.000000e+00> : vector<128xf32>
    %77 = vector.multi_reduction <add>, %76, %cst_23 [0] : vector<4x128xf32> to vector<128xf32>
    %78 = vector.shape_cast %77 : vector<128xf32> to vector<1x128xf32>
    %cst_24 = arith.constant 0.000000e+00 : f32
    %79 = vector.broadcast %cst_24 : f32 to vector<1x128xf32>
    %80 = arith.cmpf oeq, %78, %79 : vector<1x128xf32>
    %cst_25 = arith.constant 1.000000e-30 : f32
    %81 = vector.broadcast %cst_25 : f32 to vector<1x128xf32>
    %82 = arith.select %80, %81, %78 : vector<1x128xi1>, vector<1x128xf32>
    %83 = tpu.reciprocal %82 {approx = true} : vector<1x128xf32> -> vector<1x128xf32>
    %84 = arith.mulf %82, %83 : vector<1x128xf32>
    %cst_26 = arith.constant 2.000000e+00 : f32
    %85 = vector.broadcast %cst_26 : f32 to vector<1x128xf32>
    %86 = arith.subf %85, %84 : vector<1x128xf32>
    %87 = arith.mulf %83, %86 : vector<1x128xf32>
    %88 = arith.mulf %72, %87 : vector<1x128xf32>
    %89 = math.absf %88 : vector<1x128xf32>
    %cst_27 = arith.constant 1.000000e+00 : f32
    %90 = vector.broadcast %cst_27 : f32 to vector<1x128xf32>
    %91 = arith.cmpf ogt, %89, %90 : vector<1x128xf32>
    %cst_28 = arith.constant 1.000000e-30 : f32
    %92 = vector.broadcast %cst_28 : f32 to vector<1x128xf32>
    %93 = arith.maximumf %89, %92 : vector<1x128xf32>
    %94 = tpu.reciprocal %93 {approx = true} : vector<1x128xf32> -> vector<1x128xf32>
    %95 = arith.mulf %93, %94 : vector<1x128xf32>
    %cst_29 = arith.constant 2.000000e+00 : f32
    %96 = vector.broadcast %cst_29 : f32 to vector<1x128xf32>
    %97 = arith.subf %96, %95 : vector<1x128xf32>
    %98 = arith.mulf %94, %97 : vector<1x128xf32>
    %99 = arith.select %91, %98, %89 : vector<1x128xi1>, vector<1x128xf32>
    %100 = arith.mulf %99, %99 : vector<1x128xf32>
    %cst_30 = arith.constant 2.083510e-02 : f32
    %101 = vector.broadcast %cst_30 : f32 to vector<1x128xf32>
    %102 = arith.mulf %100, %101 : vector<1x128xf32>
    %cst_31 = arith.constant -8.513300e-02 : f32
    %103 = vector.broadcast %cst_31 : f32 to vector<1x128xf32>
    %104 = arith.addf %103, %102 : vector<1x128xf32>
    %105 = arith.mulf %100, %104 : vector<1x128xf32>
    %cst_32 = arith.constant 1.801410e-01 : f32
    %106 = vector.broadcast %cst_32 : f32 to vector<1x128xf32>
    %107 = arith.addf %106, %105 : vector<1x128xf32>
    %108 = arith.mulf %100, %107 : vector<1x128xf32>
    %cst_33 = arith.constant -0.330299497 : f32
    %109 = vector.broadcast %cst_33 : f32 to vector<1x128xf32>
    %110 = arith.addf %109, %108 : vector<1x128xf32>
    %111 = arith.mulf %100, %110 : vector<1x128xf32>
    %cst_34 = arith.constant 9.998660e-01 : f32
    %112 = vector.broadcast %cst_34 : f32 to vector<1x128xf32>
    %113 = arith.addf %112, %111 : vector<1x128xf32>
    %114 = arith.mulf %99, %113 : vector<1x128xf32>
    %cst_35 = arith.constant 1.57079637 : f32
    %115 = vector.broadcast %cst_35 : f32 to vector<1x128xf32>
    %116 = arith.subf %115, %114 : vector<1x128xf32>
    %117 = arith.select %91, %116, %114 : vector<1x128xi1>, vector<1x128xf32>
    %cst_36 = arith.constant 0.000000e+00 : f32
    %118 = vector.broadcast %cst_36 : f32 to vector<1x128xf32>
    %119 = arith.cmpf olt, %88, %118 : vector<1x128xf32>
    %cst_37 = arith.constant 0.000000e+00 : f32
    %120 = vector.broadcast %cst_37 : f32 to vector<1x128xf32>
    %121 = arith.subf %120, %117 : vector<1x128xf32>
    %122 = arith.select %119, %121, %117 : vector<1x128xi1>, vector<1x128xf32>
    %cst_38 = arith.constant 0.000000e+00 : f32
    %123 = vector.broadcast %cst_38 : f32 to vector<1x128xf32>
    %124 = arith.cmpf olt, %78, %123 : vector<1x128xf32>
    %cst_39 = arith.constant 0.000000e+00 : f32
    %125 = vector.broadcast %cst_39 : f32 to vector<1x128xf32>
    %126 = arith.cmpf oge, %72, %125 : vector<1x128xf32>
    %cst_40 = arith.constant 3.14159274 : f32
    %127 = vector.broadcast %cst_40 : f32 to vector<1x128xf32>
    %128 = arith.addf %122, %127 : vector<1x128xf32>
    %cst_41 = arith.constant 3.14159274 : f32
    %129 = vector.broadcast %cst_41 : f32 to vector<1x128xf32>
    %130 = arith.subf %122, %129 : vector<1x128xf32>
    %131 = arith.select %126, %128, %130 : vector<1x128xi1>, vector<1x128xf32>
    %132 = arith.select %124, %131, %122 : vector<1x128xi1>, vector<1x128xf32>
    %cst_42 = arith.constant 3.14159274 : f32
    %133 = vector.broadcast %cst_42 : f32 to vector<1x128xf32>
    %134 = arith.mulf %61, %133 : vector<1x128xf32>
    %135 = arith.addf %132, %134 : vector<1x128xf32>
    %c0_i32_43 = arith.constant 0 : i32
    %136 = vector.broadcast %c0_i32_43 : i32 to vector<12x128xi32>
    %137 = arith.cmpi eq, %22, %136 : vector<12x128xi32>
    %cst_44 = arith.constant 0.000000e+00 : f32
    %138 = vector.broadcast %cst_44 : f32 to vector<12x128xf32>
    %139 = arith.select %137, %12, %138 : vector<12x128xi1>, vector<12x128xf32>
    %cst_45 = arith.constant dense<0.000000e+00> : vector<128xf32>
    %140 = vector.multi_reduction <add>, %139, %cst_45 [0] : vector<12x128xf32> to vector<128xf32>
    %141 = vector.shape_cast %140 : vector<128xf32> to vector<1x128xf32>
    %cst_46 = arith.constant 1.000000e-01 : f32
    %142 = vector.broadcast %cst_46 : f32 to vector<1x128xf32>
    %143 = arith.mulf %141, %142 : vector<1x128xf32>
    %c1_i32_47 = arith.constant 1 : i32
    %144 = vector.broadcast %c1_i32_47 : i32 to vector<12x128xi32>
    %145 = arith.cmpi eq, %22, %144 : vector<12x128xi32>
    %cst_48 = arith.constant 0.000000e+00 : f32
    %146 = vector.broadcast %cst_48 : f32 to vector<12x128xf32>
    %147 = arith.select %145, %12, %146 : vector<12x128xi1>, vector<12x128xf32>
    %cst_49 = arith.constant dense<0.000000e+00> : vector<128xf32>
    %148 = vector.multi_reduction <add>, %147, %cst_49 [0] : vector<12x128xf32> to vector<128xf32>
    %149 = vector.shape_cast %148 : vector<128xf32> to vector<1x128xf32>
    %cst_50 = arith.constant 1.000000e-01 : f32
    %150 = vector.broadcast %cst_50 : f32 to vector<1x128xf32>
    %151 = arith.mulf %149, %150 : vector<1x128xf32>
    %c2_i32_51 = arith.constant 2 : i32
    %152 = vector.broadcast %c2_i32_51 : i32 to vector<12x128xi32>
    %153 = arith.cmpi eq, %22, %152 : vector<12x128xi32>
    %cst_52 = arith.constant 0.000000e+00 : f32
    %154 = vector.broadcast %cst_52 : f32 to vector<12x128xf32>
    %155 = arith.select %153, %12, %154 : vector<12x128xi1>, vector<12x128xf32>
    %cst_53 = arith.constant dense<0.000000e+00> : vector<128xf32>
    %156 = vector.multi_reduction <add>, %155, %cst_53 [0] : vector<12x128xf32> to vector<128xf32>
    %157 = vector.shape_cast %156 : vector<128xf32> to vector<1x128xf32>
    %cst_54 = arith.constant 1.000000e-01 : f32
    %158 = vector.broadcast %cst_54 : f32 to vector<1x128xf32>
    %159 = arith.mulf %157, %158 : vector<1x128xf32>
    %160 = vector.extract_strided_slice %13 {offsets = [0, 0], sizes = [1, 128], strides = [1, 1]} : vector<4x128xf32> to vector<1x128xf32>
    %161 = vector.extract_strided_slice %13 {offsets = [2, 0], sizes = [1, 128], strides = [1, 1]} : vector<4x128xf32> to vector<1x128xf32>
    %162 = arith.addf %160, %161 : vector<1x128xf32>
    %cst_55 = arith.constant 5.000000e-01 : f32
    %163 = vector.broadcast %cst_55 : f32 to vector<1x128xf32>
    %164 = arith.mulf %162, %163 : vector<1x128xf32>
    %165 = vector.extract_strided_slice %13 {offsets = [1, 0], sizes = [1, 128], strides = [1, 1]} : vector<4x128xf32> to vector<1x128xf32>
    %166 = vector.extract_strided_slice %13 {offsets = [3, 0], sizes = [1, 128], strides = [1, 1]} : vector<4x128xf32> to vector<1x128xf32>
    %167 = arith.addf %165, %166 : vector<1x128xf32>
    %cst_56 = arith.constant 5.000000e-01 : f32
    %168 = vector.broadcast %cst_56 : f32 to vector<1x128xf32>
    %169 = arith.mulf %167, %168 : vector<1x128xf32>
    %cst_57 = arith.constant 0.00999999977 : f32
    %170 = vector.broadcast %cst_57 : f32 to vector<1x128xf32>
    %171 = arith.mulf %170, %164 : vector<1x128xf32>
    %172 = arith.addf %143, %171 : vector<1x128xf32>
    %cst_58 = arith.constant 0.00999999977 : f32
    %173 = vector.broadcast %cst_58 : f32 to vector<1x128xf32>
    %174 = arith.mulf %173, %169 : vector<1x128xf32>
    %175 = arith.addf %151, %174 : vector<1x128xf32>
    %cst_59 = arith.constant 1.000000e+00 : f32
    %176 = vector.broadcast %cst_59 : f32 to vector<1x128xf32>
    %177 = arith.addf %175, %176 : vector<1x128xf32>
    %cst_60 = arith.constant 1.000000e+01 : f32
    %178 = vector.broadcast %cst_60 : f32 to vector<1x128xf32>
    %179 = arith.addf %159, %178 : vector<1x128xf32>
    %cst_61 = arith.constant 0.000000e+00 : f32
    %180 = vector.broadcast %cst_61 : f32 to vector<1x128xf32>
    %181 = arith.cmpf oeq, %177, %180 : vector<1x128xf32>
    %cst_62 = arith.constant 1.000000e-30 : f32
    %182 = vector.broadcast %cst_62 : f32 to vector<1x128xf32>
    %183 = arith.select %181, %182, %177 : vector<1x128xi1>, vector<1x128xf32>
    %184 = tpu.reciprocal %183 {approx = true} : vector<1x128xf32> -> vector<1x128xf32>
    %185 = arith.mulf %183, %184 : vector<1x128xf32>
    %cst_63 = arith.constant 2.000000e+00 : f32
    %186 = vector.broadcast %cst_63 : f32 to vector<1x128xf32>
    %187 = arith.subf %186, %185 : vector<1x128xf32>
    %188 = arith.mulf %184, %187 : vector<1x128xf32>
    %189 = arith.mulf %172, %188 : vector<1x128xf32>
    %190 = math.absf %189 : vector<1x128xf32>
    %cst_64 = arith.constant 1.000000e+00 : f32
    %191 = vector.broadcast %cst_64 : f32 to vector<1x128xf32>
    %192 = arith.cmpf ogt, %190, %191 : vector<1x128xf32>
    %cst_65 = arith.constant 1.000000e-30 : f32
    %193 = vector.broadcast %cst_65 : f32 to vector<1x128xf32>
    %194 = arith.maximumf %190, %193 : vector<1x128xf32>
    %195 = tpu.reciprocal %194 {approx = true} : vector<1x128xf32> -> vector<1x128xf32>
    %196 = arith.mulf %194, %195 : vector<1x128xf32>
    %cst_66 = arith.constant 2.000000e+00 : f32
    %197 = vector.broadcast %cst_66 : f32 to vector<1x128xf32>
    %198 = arith.subf %197, %196 : vector<1x128xf32>
    %199 = arith.mulf %195, %198 : vector<1x128xf32>
    %200 = arith.select %192, %199, %190 : vector<1x128xi1>, vector<1x128xf32>
    %201 = arith.mulf %200, %200 : vector<1x128xf32>
    %cst_67 = arith.constant 2.083510e-02 : f32
    %202 = vector.broadcast %cst_67 : f32 to vector<1x128xf32>
    %203 = arith.mulf %201, %202 : vector<1x128xf32>
    %cst_68 = arith.constant -8.513300e-02 : f32
    %204 = vector.broadcast %cst_68 : f32 to vector<1x128xf32>
    %205 = arith.addf %204, %203 : vector<1x128xf32>
    %206 = arith.mulf %201, %205 : vector<1x128xf32>
    %cst_69 = arith.constant 1.801410e-01 : f32
    %207 = vector.broadcast %cst_69 : f32 to vector<1x128xf32>
    %208 = arith.addf %207, %206 : vector<1x128xf32>
    %209 = arith.mulf %201, %208 : vector<1x128xf32>
    %cst_70 = arith.constant -0.330299497 : f32
    %210 = vector.broadcast %cst_70 : f32 to vector<1x128xf32>
    %211 = arith.addf %210, %209 : vector<1x128xf32>
    %212 = arith.mulf %201, %211 : vector<1x128xf32>
    %cst_71 = arith.constant 9.998660e-01 : f32
    %213 = vector.broadcast %cst_71 : f32 to vector<1x128xf32>
    %214 = arith.addf %213, %212 : vector<1x128xf32>
    %215 = arith.mulf %200, %214 : vector<1x128xf32>
    %cst_72 = arith.constant 1.57079637 : f32
    %216 = vector.broadcast %cst_72 : f32 to vector<1x128xf32>
    %217 = arith.subf %216, %215 : vector<1x128xf32>
    %218 = arith.select %192, %217, %215 : vector<1x128xi1>, vector<1x128xf32>
    %cst_73 = arith.constant 0.000000e+00 : f32
    %219 = vector.broadcast %cst_73 : f32 to vector<1x128xf32>
    %220 = arith.cmpf olt, %189, %219 : vector<1x128xf32>
    %cst_74 = arith.constant 0.000000e+00 : f32
    %221 = vector.broadcast %cst_74 : f32 to vector<1x128xf32>
    %222 = arith.subf %221, %218 : vector<1x128xf32>
    %223 = arith.select %220, %222, %218 : vector<1x128xi1>, vector<1x128xf32>
    %224 = arith.addf %135, %223 : vector<1x128xf32>
    %c0_75 = arith.constant 0 : index
    %c0_76 = arith.constant 0 : index
    %225 = vector.load %arg2[%c0_75, %c0_76] : memref<8x128xf32, #tpu.memory_space<vmem>>, vector<1x128xf32>
    tpu.vector_store %arg2[%c0_75, %c0_76], %224 {strides = array<i32>} : memref<8x128xf32, #tpu.memory_space<vmem>>, vector<1x128xf32>,
    %c1 = arith.constant 1 : index
    %c0_77 = arith.constant 0 : index
    %226 = vector.load %arg2[%c1, %c0_77] : memref<8x128xf32, #tpu.memory_space<vmem>>, vector<1x128xf32>
    tpu.vector_store %arg2[%c1, %c0_77], %31 {strides = array<i32>} : memref<8x128xf32, #tpu.memory_space<vmem>>, vector<1x128xf32>,
    %c2 = arith.constant 2 : index
    %c0_78 = arith.constant 0 : index
    %227 = vector.load %arg2[%c2, %c0_78] : memref<8x128xf32, #tpu.memory_space<vmem>>, vector<1x128xf32>
    tpu.vector_store %arg2[%c2, %c0_78], %40 {strides = array<i32>} : memref<8x128xf32, #tpu.memory_space<vmem>>, vector<1x128xf32>,
    %c3 = arith.constant 3 : index
    %c0_79 = arith.constant 0 : index
    %228 = vector.load %arg2[%c3, %c0_79] : memref<8x128xf32, #tpu.memory_space<vmem>>, vector<1x128xf32>
    tpu.vector_store %arg2[%c3, %c0_79], %49 {strides = array<i32>} : memref<8x128xf32, #tpu.memory_space<vmem>>, vector<1x128xf32>,
    %c4 = arith.constant 4 : index
    %c0_80 = arith.constant 0 : index
    %229 = vector.load %arg2[%c4, %c0_80] : memref<8x128xf32, #tpu.memory_space<vmem>>, vector<1x128xf32>
    tpu.vector_store %arg2[%c4, %c0_80], %172 {strides = array<i32>} : memref<8x128xf32, #tpu.memory_space<vmem>>, vector<1x128xf32>,
    %c5 = arith.constant 5 : index
    %c0_81 = arith.constant 0 : index
    %230 = vector.load %arg2[%c5, %c0_81] : memref<8x128xf32, #tpu.memory_space<vmem>>, vector<1x128xf32>
    tpu.vector_store %arg2[%c5, %c0_81], %177 {strides = array<i32>} : memref<8x128xf32, #tpu.memory_space<vmem>>, vector<1x128xf32>,
    %c6 = arith.constant 6 : index
    %c0_82 = arith.constant 0 : index
    %231 = vector.load %arg2[%c6, %c0_82] : memref<8x128xf32, #tpu.memory_space<vmem>>, vector<1x128xf32>
    tpu.vector_store %arg2[%c6, %c0_82], %179 {strides = array<i32>} : memref<8x128xf32, #tpu.memory_space<vmem>>, vector<1x128xf32>,
    %c7 = arith.constant 7 : index
    %c0_83 = arith.constant 0 : index
    %232 = vector.load %arg2[%c7, %c0_83] : memref<8x128xf32, #tpu.memory_space<vmem>>, vector<1x128xf32>
    tpu.vector_store %arg2[%c7, %c0_83], %135 {strides = array<i32>} : memref<8x128xf32, #tpu.memory_space<vmem>>, vector<1x128xf32>,
    return
  }
  func.func @transform_0(%arg0: i32) -> (i32, i32) {
    %c0_i32 = arith.constant 0 : i32
    %c0_i32_0 = arith.constant 0 : i32
    return %c0_i32, %arg0 : i32, i32
  }
  func.func @transform_1(%arg0: i32) -> (i32, i32) {
    %c0_i32 = arith.constant 0 : i32
    %c0_i32_0 = arith.constant 0 : i32
    return %c0_i32, %arg0 : i32, i32
  }
}

</mosaic_0001>

<llo_original>
// kernel: postprocess_box3d.1
$region0: #{postprocess_box3d.1}
  #allocation0 [shape = 'u32[]', space=smem, size = 0x4, offset = 0x4, fixed_abs, tag = 'smem constant byte address 0x4 - core index']
  #allocation1 [shape = 'u32[72,128]{1,0:T(1,128)}', space=vmem, size = 0x9000, scoped, tag = 'internal scratch']
  %s0 = inlined_call_operand.vmem [shape: f32[35,128], index: 0, kind: input, shape index: {}]
  %s1 = inlined_call_operand.vmem [shape: f32[8,128], index: 1, kind: output, shape index: {}]
  %s2 = sld [smem:[#allocation0]]
  $region14: #{postprocess_box3d.1} parent=0
    _
  %s4 = ssub.s32 1, %s2
  %s5 = scalar_select 0, %s4, %s2
  // Predicated region
  $region2: #{postprocess_box3d.1} parent=0 // pred_check
    _
  $region3: #{postprocess_box3d.1} parent=0 // pred_check_branch
    %7 = sbr.rel (0) target = $region5
  $region4: #{postprocess_box3d.1} parent=0 // pred_region
    _
  $region5: #{postprocess_box3d.1} parent=0 // pred_fallthru
    _
  %v8 = vld [vmem:[%s0] sm:$0xff]
  %v9 = vld [vmem:[%s0 + $0x8] sm:$0xff]
  %v10 = vld [vmem:[%s0 + $0x10] sm:$0xff]
  %v11 = vld [vmem:[%s0 + $0x18] sm:$0xff]
  %v12 = vld [vmem:[%s0 + $0x20] sm:$0x7]
  %v13 = vcvt.f32.s32.to.zero.pseudo %v8
  %v14 = vsub.s32 %v13, 1
  %vm15 = vcmp.gt.s32.totalorder %v14, 0
  %v16 = vsel %vm15, %v14, 0
  %vm17 = vcmp.lt.s32.totalorder %v16, 3
  %v18 = vsel %vm17, %v16, 3
  %v19 = vlaneseq
  %v20 = vshrl.u32 %v19, 7
  %v21 = vadd.s32 %v20, 8
  %v22 = vmul.u32 %v18, 3
  %v23 = vperm.slane %v22, 0
  %v24 = vsub.s32 %v20, %v23
  %v25 = vsub.s32 %v21, %v23
  %v26 = vmul.u32 %v18, 2
  %v27 = vperm.slane %v26, 0
  %v28 = vsub.s32 %v20, %v27
  %v29 = vsub.s32 %v21, %v27
  %vm30 = vcmp.eq.s32.totalorder %v24, 0
  %vm31 = vcmp.eq.s32.totalorder %v25, 0
  %vm34 = vcmask 1046528
  %v35 = vrot.slane %v8, 1
  %v36 = vrot.slane %v9, 1
  %v37 = vsel %vm34, %v35, %v36
  %v40 = vsel %vm30, %v37, 0.0
  %v41 = vsel %vm31, %v36, 0.0
  %vm42 = vcmask 1043456
  %v43 = vsel %vm42, %v41, 0.0
  %v44 = vadd.f32 %v40, %v43
  %v45 = vrot.slane %v44, 4
  %v46 = vadd.f32 %v44, %v45
  %v47 = vrot.slane %v46, 2
  %v48 = vadd.f32 %v46, %v47
  %v49 = vrot.slane %v48, 1
  %v50 = vadd.f32 %v48, %v49
  %v51 = vmul.f32 %v50, 0.2
  %v52 = vmul.f32 %v51, 1.442695
  %v53 = vpow.pop %v52
  %vm54 = vcmp.eq.s32.totalorder %v24, 1
  %vm55 = vcmp.eq.s32.totalorder %v25, 1
  %v56 = vsel %vm54, %v37, 0.0
  %v57 = vsel %vm55, %v36, 0.0
  %v58 = vsel %vm42, %v57, 0.0
  %v59 = vadd.f32 %v56, %v58
  %v60 = vrot.slane %v59, 4
  %v61 = vadd.f32 %v59, %v60
  %v62 = vrot.slane %v61, 2
  %v63 = vadd.f32 %v61, %v62
  %v64 = vrot.slane %v63, 1
  %v65 = vadd.f32 %v63, %v64
  %v66 = vmul.f32 %v65, 0.2
  %v67 = vmul.f32 %v66, 1.442695
  %v68 = vpow.pop %v67
  %vm69 = vcmp.eq.s32.totalorder %v24, 2
  %vm70 = vcmp.eq.s32.totalorder %v25, 2
  %v71 = vsel %vm69, %v37, 0.0
  %v72 = vsel %vm70, %v36, 0.0
  %v73 = vsel %vm42, %v72, 0.0
  %v74 = vadd.f32 %v71, %v73
  %v75 = vrot.slane %v74, 4
  %v76 = vadd.f32 %v74, %v75
  %v77 = vrot.slane %v76, 2
  %v78 = vadd.f32 %v76, %v77
  %v79 = vrot.slane %v78, 1
  %v80 = vadd.f32 %v78, %v79
  %v81 = vmul.f32 %v80, 0.2
  %v82 = vmul.f32 %v81, 1.442695
  %v83 = vpow.pop %v82
  %vm84 = vcmask 1046533
  %v85 = vsel %vm84, %v9, -inf
  %v86 = vrot.slane %v85, 4
  %v87 = vmax.f32 %v85, %v86
  %v88 = vrot.slane %v87, 2
  %v89 = vmax.f32 %v87, %v88
  %v90 = vrot.slane %v89, 1
  %v91 = vmax.f32 %v89, %v90
  %vm92 = vcmp.ge.f32.partialorder %v9, %v91
  %v93 = vrot.slane %v20, 3
  %v94 = vsel %vm92, %v93, 2
  %v95 = vsel %vm84, %v94, 2147483647
  %v96 = vrot.slane %v95, 4
  %vm97 = vcmp.lt.s32.totalorder %v95, %v96
  %v98 = vsel %vm97, %v95, %v96
  %v99 = vrot.slane %v98, 2
  %vm100 = vcmp.lt.s32.totalorder %v98, %v99
  %v101 = vsel %vm100, %v98, %v99
  %v102 = vrot.slane %v101, 1
  %vm103 = vcmp.lt.s32.totalorder %v101, %v102
  %v104 = vsel %vm103, %v101, %v102
  %vm105 = vcmp.lt.s32.totalorder %v104, 1
  %v106 = vsel %vm105, %v104, 1
  %v107 = vcvt.s32.f32 %v106
  %v108 = vmul.u32 %v106, 2
  %v109 = vsub.s32 %v20, %v108
  %vm110 = vcmp.eq.s32.totalorder %v109, 0
  %vm112 = vcmask 1040384
  %v113 = vrot.slane %v9, 7
  %v114 = vrot.slane %v10, 7
  %v115 = vsel %vm112, %v113, %v114
  %v117 = vsel %vm110, %v115, 0.0
  %v118 = vsel %vm42, %v117, 0.0
  %v119 = vrot.slane %v118, 4
  %v120 = vadd.f32 %v118, %v119
  %v121 = vrot.slane %v120, 2
  %v122 = vadd.f32 %v120, %v121
  %v123 = vrot.slane %v122, 1
  %v124 = vadd.f32 %v122, %v123
  %vm125 = vcmp.eq.s32.totalorder %v109, 1
  %v126 = vsel %vm125, %v115, 0.0
  %v127 = vsel %vm42, %v126, 0.0
  %v128 = vrot.slane %v127, 4
  %v129 = vadd.f32 %v127, %v128
  %v130 = vrot.slane %v129, 2
  %v131 = vadd.f32 %v129, %v130
  %v132 = vrot.slane %v131, 1
  %v133 = vadd.f32 %v131, %v132
  %vm134 = vcmp.eq.f32.partialorder %v133, 0.0
  %v135 = vsel %vm134, 1e-30, %v133
  %v136 = vrcp.pop %v135
  %v137 = vmul.f32 %v135, %v136
  %v138 = vsub.f32 2.0, %v137
  %v139 = vmul.f32 %v136, %v138
  %v140 = vmul.f32 %v124, %v139
  %v141 = vand.u32 2147483647, %v140
  %vm142 = vcmp.gt.f32.partialorder %v141, 1.0
  %v143 = vmax.f32 %v141, 1e-30
  %v144 = vrcp.pop %v143
  %v145 = vmul.f32 %v143, %v144
  %v146 = vsub.f32 2.0, %v145
  %v147 = vmul.f32 %v144, %v146
  %v148 = vsel %vm142, %v147, %v141
  %v149 = vmul.f32 %v148, %v148
  %v150 = vmul.f32 %v149, 0.0208351
  %v151 = vadd.f32 %v150, -0.085133
  %v152 = vmul.f32 %v149, %v151
  %v153 = vadd.f32 %v152, 0.180141
  %v154 = vmul.f32 %v149, %v153
  %v155 = vadd.f32 %v154, -0.3302995
  %v156 = vmul.f32 %v149, %v155
  %v157 = vadd.f32 %v156, 0.999866
  %v158 = vmul.f32 %v148, %v157
  %v159 = vsub.f32 1.5707964, %v158
  %v160 = vsel %vm142, %v159, %v158
  %vm161 = vcmp.lt.f32.partialorder %v140, 0.0
  %v162 = vsub.f32 0.0, %v160
  %v163 = vsel %vm161, %v162, %v160
  %vm164 = vcmp.lt.f32.partialorder %v133, 0.0
  %vm165 = vcmp.ge.f32.partialorder %v124, 0.0
  %v166 = vadd.f32 %v163, 3.1415927
  %v167 = vsub.f32 %v163, 3.1415927
  %v168 = vsel %vm165, %v166, %v167
  %v169 = vsel %vm164, %v168, %v163
  %v170 = vmul.f32 %v107, 3.1415927
  %v171 = vadd.f32 %v169, %v170
  %vm172 = vcmp.eq.s32.totalorder %v28, 0
  %vm173 = vcmp.eq.s32.totalorder %v29, 0
  %vm175 = vcmask 1044480
  %v176 = vrot.slane %v10, 3
  %v177 = vrot.slane %v11, 3
  %v178 = vsel %vm175, %v176, %v177
  %v181 = vsel %vm172, %v178, 0.0
  %v182 = vsel %vm173, %v177, 0.0
  %v183 = vsel %vm42, %v182, 0.0
  %v184 = vadd.f32 %v181, %v183
  %v185 = vrot.slane %v184, 4
  %v186 = vadd.f32 %v184, %v185
  %v187 = vrot.slane %v186, 2
  %v188 = vadd.f32 %v186, %v187
  %v189 = vrot.slane %v188, 1
  %v190 = vadd.f32 %v188, %v189
  %v191 = vmul.f32 %v190, 0.1
  %vm192 = vcmp.eq.s32.totalorder %v28, 1
  %vm193 = vcmp.eq.s32.totalorder %v29, 1
  %v194 = vsel %vm192, %v178, 0.0
  %v195 = vsel %vm193, %v177, 0.0
  %v196 = vsel %vm42, %v195, 0.0
  %v197 = vadd.f32 %v194, %v196
  %v198 = vrot.slane %v197, 4
  %v199 = vadd.f32 %v197, %v198
  %v200 = vrot.slane %v199, 2
  %v201 = vadd.f32 %v199, %v200
  %v202 = vrot.slane %v201, 1
  %v203 = vadd.f32 %v201, %v202
  %v204 = vmul.f32 %v203, 0.1
  %vm205 = vcmp.eq.s32.totalorder %v28, 2
  %vm206 = vcmp.eq.s32.totalorder %v29, 2
  %v207 = vsel %vm205, %v178, 0.0
  %v208 = vsel %vm206, %v177, 0.0
  %v209 = vsel %vm42, %v208, 0.0
  %v210 = vadd.f32 %v207, %v209
  %v211 = vrot.slane %v210, 4
  %v212 = vadd.f32 %v210, %v211
  %v213 = vrot.slane %v212, 2
  %v214 = vadd.f32 %v212, %v213
  %v215 = vrot.slane %v214, 1
  %v216 = vadd.f32 %v214, %v215
  %v217 = vmul.f32 %v216, 0.1
  %v219 = vrot.slane %v12, 2
  %v221 = vadd.f32 %v11, %v219
  %v222 = vmul.f32 %v221, 0.5
  %v223 = vadd.f32 %v12, %v219
  %v224 = vmul.f32 %v223, 0.5
  %v225 = vmul.f32 %v222, 0.01
  %v226 = vadd.f32 %v191, %v225
  %v227 = vmul.f32 %v224, 0.01
  %v228 = vadd.f32 %v204, %v227
  %v229 = vadd.f32 %v228, 1.0
  %v230 = vadd.f32 %v217, 10.0
  %vm231 = vcmp.eq.f32.partialorder %v229, 0.0
  %v232 = vsel %vm231, 1e-30, %v229
  %v233 = vrcp.pop %v232
  %v234 = vmul.f32 %v232, %v233
  %v235 = vsub.f32 2.0, %v234
  %v236 = vmul.f32 %v233, %v235
  %v238 = vrot.slane %v236, 1
  %v240 = vmul.f32 %v226, %v238
  %v241 = vand.u32 2147483647, %v240
  %vm242 = vcmp.gt.f32.partialorder %v241, 1.0
  %v243 = vmax.f32 %v241, 1e-30
  %v244 = vrcp.pop %v243
  %v245 = vmul.f32 %v243, %v244
  %v246 = vsub.f32 2.0, %v245
  %v247 = vmul.f32 %v244, %v246
  %v248 = vsel %vm242, %v247, %v241
  %v249 = vmul.f32 %v248, %v248
  %v250 = vmul.f32 %v249, 0.0208351
  %v251 = vadd.f32 %v250, -0.085133
  %v252 = vmul.f32 %v249, %v251
  %v253 = vadd.f32 %v252, 0.180141
  %v254 = vmul.f32 %v249, %v253
  %v255 = vadd.f32 %v254, -0.3302995
  %v256 = vmul.f32 %v249, %v255
  %v257 = vadd.f32 %v256, 0.999866
  %v258 = vmul.f32 %v248, %v257
  %v259 = vsub.f32 1.5707964, %v258
  %v260 = vsel %vm242, %v259, %v258
  %vm261 = vcmp.lt.f32.partialorder %v240, 0.0
  %v262 = vsub.f32 0.0, %v260
  %v263 = vsel %vm261, %v262, %v260
  %v264 = vadd.f32 %v171, %v263
  %265 = vst [vmem:[%s1 - $0x7] sm:$0x80] %v264
  %266 = vst [vmem:[%s1 + $0x1] sm:$0x1] %v53
  %267 = vst [vmem:[%s1 + $0x2] sm:$0x1] %v68
  %268 = vst [vmem:[%s1 + $0x3] sm:$0x1] %v83
  %269 = vst [vmem:[%s1 - $0x3] sm:$0x80] %v226
  %270 = vst [vmem:[%s1 + $0x5] sm:$0x1] %v229
  %271 = vst [vmem:[%s1 + $0x6] sm:$0x1] %v230
  %272 = vst [vmem:[%s1 + $0x7] sm:$0x1] %v171
  // Predicated region
  $region6: #{postprocess_box3d.1} parent=0 // pred_check
    _
  $region7: #{postprocess_box3d.1} parent=0 // pred_check_branch
    %274 = sbr.rel (0) target = $region9
  $region8: #{postprocess_box3d.1} parent=0 // pred_region
    _
  $region9: #{postprocess_box3d.1} parent=0 // pred_fallthru
    _
  // Predicated region
  $region10: #{postprocess_box3d.1} parent=0 // pred_check
    _
  $region11: #{postprocess_box3d.1} parent=0 // pred_check_branch
    %276 = sbr.rel (0) target = $region13
  $region12: #{postprocess_box3d.1} parent=0 // pred_region
    _
  $region13: #{postprocess_box3d.1} parent=0 // pred_fallthru
    _

</llo_original>
